<compile_context>
chip_gen: v5e
topology: v5e:2x2
jax: 0.10.0
libtpu: 0.0.40
codegen_flags: <defaults>
</compile_context>

<pallas_src>
import jax
import jax.numpy as jnp
from jax.experimental import pallas as pl
from jax.experimental.pallas import tpu as pltpu

_LANES = 128
_SUBLANES = 8
_TILE = _LANES * _SUBLANES  # 1024 elements per full f32 vreg tile


def _bce_sum_kernel(pred_ref, tgt_ref, out_ref):
    # pred_ref / tgt_ref : (Rtot, 128) VMEM, Rtot % 8 == 0 (mask already folded in)
    # out_ref            : (8, 128) lane/sublane-dense partial sums
    p = pred_ref[...].astype(jnp.float32)
    t = tgt_ref[...].astype(jnp.float32)

    # PyTorch F.binary_cross_entropy clamps each log term at -100.
    log_p = jnp.maximum(jnp.log(p), jnp.float32(-100.0))
    log_1mp = jnp.maximum(jnp.log(1.0 - p), jnp.float32(-100.0))
    bce = -(t * log_p + (1.0 - t) * log_1mp)  # (Rtot, 128)

    # Reduce across groups of 8 sublanes: pure VALU vreg adds, no XLU needed.
    r = bce.shape[0]
    out_ref[...] = jnp.sum(bce.reshape(r // _SUBLANES, _SUBLANES, _LANES), axis=0)


def bce_loss_pallas(output, mask, ind, target):
    """Pallas implementation of BCELoss.forward(output, mask, ind, target)."""
    B, C, H, W = output.shape
    K = ind.shape[1]
    HW = H * W
    total = B * K * C

    # Gather directly from NCHW (no full transpose pass over HBM):
    # pred[b, k, c] = output[b, c, ind[b, k]]
    ind_i = jnp.clip(ind.astype(jnp.int32), 0, HW - 1)
    out_flat = output.reshape(B, C, HW)
    pred = jnp.take_along_axis(out_flat, ind_i[:, None, :], axis=2)  # (B, C, K)
    pred = jnp.transpose(pred, (0, 2, 1))                            # (B, K, C) — tiny

    # Fold the mask into pred/target: masked-out elements become (p=1, t=1),
    # whose clamped BCE is exactly 0. Padding uses the same values.
    mask_b = (mask != 0)                                             # (B, K)
    mb = mask_b[:, :, None]
    pred_f = jnp.where(mb, pred, jnp.float32(1.0))
    tgt_f = jnp.where(mb, target.astype(jnp.float32), jnp.float32(1.0))

    # Flatten and pad to a multiple of 1024 so the slab is full (8,128) vregs.
    padded = ((total + _TILE - 1) // _TILE) * _TILE
    pad = padded - total
    r_tot = padded // _LANES  # multiple of 8

    def _pack(x):
        x = x.reshape(total)
        if pad:
            x = jnp.pad(x, (0, pad), constant_values=jnp.float32(1.0))
        return x.reshape(r_tot, _LANES)

    pred_p = _pack(pred_f)
    tgt_p = _pack(tgt_f)

    partial = pl.pallas_call(
        _bce_sum_kernel,
        out_shape=jax.ShapeDtypeStruct((_SUBLANES, _LANES), jnp.float32),
        in_specs=[
            pl.BlockSpec(memory_space=pltpu.MemorySpace.VMEM),
            pl.BlockSpec(memory_space=pltpu.MemorySpace.VMEM),
        ],
        out_specs=pl.BlockSpec(memory_space=pltpu.MemorySpace.VMEM),
    )(pred_p, tgt_p)

    loss_sum = jnp.sum(partial)
    cnt = jnp.sum(mask_b).astype(jnp.float32) * jnp.float32(C)
    # PyTorch returns 0.0 when mask.sum() == 0; safe divide to avoid NaN.
    return jnp.where(cnt > 0, loss_sum / jnp.maximum(cnt, 1.0), jnp.float32(0.0))


def bce_loss_ref(output, mask, ind, target):
    """Pure-JAX reference mirroring the PyTorch module."""
    B, C, H, W = output.shape
    feat = jnp.transpose(output, (0, 2, 3, 1)).reshape(B, H * W, C)
    pred = jnp.take_along_axis(feat, ind[:, :, None].astype(jnp.int32), axis=1)  # (B,K,C)
    m = (mask != 0)
    log_p = jnp.maximum(jnp.log(pred), -100.0)
    log_1mp = jnp.maximum(jnp.log(1.0 - pred), -100.0)
    bce = -(target * log_p + (1.0 - target) * log_1mp)
    denom = jnp.sum(m).astype(jnp.float32) * C
    num = jnp.sum(bce * m[:, :, None].astype(jnp.float32))
    return jnp.where(denom > 0, num / jnp.maximum(denom, 1.0), jnp.float32(0.0))


if __name__ == "__main__":
    B, C, H, W, K = 2, 4, 16, 16, 8

    key = jax.random.PRNGKey(0)
    k_out, k_ind, k_tgt, k_msk = jax.random.split(key, 4)

    # Predictions must be probabilities in (0, 1) for BCE.
    output = jax.nn.sigmoid(jax.random.normal(k_out, (B, C, H, W), dtype=jnp.float32))
    ind = jax.random.randint(k_ind, (B, K), 0, H * W, dtype=jnp.int32)
    target = jax.random.uniform(k_tgt, (B, K, C), dtype=jnp.float32)
    mask = jax.random.bernoulli(k_msk, 0.7, (B, K)).astype(jnp.float32)

    loss = jax.block_until_ready(bce_loss_pallas(output, mask, ind, target))
    loss_ref = jax.block_until_ready(bce_loss_ref(output, mask, ind, target))

    assert jnp.allclose(loss, loss_ref, rtol=1e-5, atol=1e-6), (loss, loss_ref)

    # Empty-mask path (PyTorch returns 0.0).
    zero_mask = jnp.zeros((B, K), dtype=jnp.float32)
    loss0 = jax.block_until_ready(bce_loss_pallas(output, zero_mask, ind, target))
    assert jnp.allclose(loss0, 0.0), loss0

    print("KERNEL_OK")
</pallas_src>

<mosaic_0001>
module attributes {stable_mosaic.version = 11 : i64} {
  func.func @_bce_sum_kernel(%arg0: memref<8x128xf32, #tpu.memory_space<vmem>>, %arg1: memref<8x128xf32, #tpu.memory_space<vmem>>, %arg2: memref<8x128xf32, #tpu.memory_space<vmem>>) attributes {dimension_semantics = [], scalar_prefetch = 0 : i64, scratch_operands = 0 : i64, tpu.core_type = #tpu.core_type<tc>} {
    %c0 = arith.constant 0 : index
    %c0_0 = arith.constant 0 : index
    %0 = vector.load %arg0[%c0, %c0_0] : memref<8x128xf32, #tpu.memory_space<vmem>>, vector<8x128xf32>
    %c0_1 = arith.constant 0 : index
    %c0_2 = arith.constant 0 : index
    %1 = vector.load %arg1[%c0_1, %c0_2] : memref<8x128xf32, #tpu.memory_space<vmem>>, vector<8x128xf32>
    %2 = math.log %0 : vector<8x128xf32>
    %cst = arith.constant -1.000000e+02 : f32
    %3 = vector.broadcast %cst : f32 to vector<8x128xf32>
    %4 = arith.maximumf %2, %3 : vector<8x128xf32>
    %cst_3 = arith.constant 1.000000e+00 : f32
    %5 = vector.broadcast %cst_3 : f32 to vector<8x128xf32>
    %6 = arith.subf %5, %0 : vector<8x128xf32>
    %7 = math.log %6 : vector<8x128xf32>
    %cst_4 = arith.constant -1.000000e+02 : f32
    %8 = vector.broadcast %cst_4 : f32 to vector<8x128xf32>
    %9 = arith.maximumf %7, %8 : vector<8x128xf32>
    %10 = arith.mulf %1, %4 : vector<8x128xf32>
    %cst_5 = arith.constant 1.000000e+00 : f32
    %11 = vector.broadcast %cst_5 : f32 to vector<8x128xf32>
    %12 = arith.subf %11, %1 : vector<8x128xf32>
    %13 = arith.mulf %12, %9 : vector<8x128xf32>
    %14 = arith.addf %10, %13 : vector<8x128xf32>
    %cst_6 = arith.constant 0.000000e+00 : f32
    %15 = vector.broadcast %cst_6 : f32 to vector<8x128xf32>
    %16 = arith.subf %15, %14 : vector<8x128xf32>
    %17 = vector.shape_cast %16 : vector<8x128xf32> to vector<1x8x128xf32>
    %cst_7 = arith.constant dense<0.000000e+00> : vector<8x128xf32>
    %18 = vector.multi_reduction <add>, %17, %cst_7 [0] : vector<1x8x128xf32> to vector<8x128xf32>
    %c0_8 = arith.constant 0 : index
    %c0_9 = arith.constant 0 : index
    %19 = vector.load %arg2[%c0_8, %c0_9] : memref<8x128xf32, #tpu.memory_space<vmem>>, vector<8x128xf32>
    tpu.vector_store %arg2[%c0_8, %c0_9], %18 {strides = array<i32>} : memref<8x128xf32, #tpu.memory_space<vmem>>, vector<8x128xf32>,
    return
  }
}

</mosaic_0001>

<llo_original>
// kernel: tpu_custom_call.1
$region0: #{tpu_custom_call.1}
  #allocation0 [shape = 'u32[]', space=smem, size = 0x4, offset = 0x4, fixed_abs, tag = 'smem constant byte address 0x4 - core index']
  #allocation1 [shape = 'u32[72,128]{1,0:T(1,128)}', space=vmem, size = 0x9000, scoped, tag = 'internal scratch']
  %s0 = inlined_call_operand.hbm [shape: f32[8,128], index: 0, kind: input, shape index: {}]
  %s1 = inlined_call_operand.hbm [shape: f32[8,128], index: 1, kind: input, shape index: {}]
  %s2 = inlined_call_operand.hbm [shape: f32[8,128], index: 2, kind: output, shape index: {}]
  %s3 = sld [smem:[#allocation0]]
  $region26: #{tpu_custom_call.1} parent=0
    _
  %s5 = ssub.s32 1, %s3
  %s6 = scalar_select 0, %s5, %s3
  $region1: #{tpu_custom_call.1} parent=0
    #allocation2 [shape = 'u8[4096]{0}', space=vmem, size = 0x1000, scoped, tag = 'input window, operand 0, single buffered']
    #allocation3 [shape = 's32[1]{0}', space=sflag, size = 0x4, scoped, tag = 'scoped memory for tpu_custom_call.1']
    #allocation4 [shape = 's32[1]{0}', space=sflag, size = 0x4, scoped, tag = 'scoped memory for tpu_custom_call.1']
    #allocation5 [shape = 'u8[4096]{0}', space=vmem, size = 0x1000, scoped, tag = 'input window, operand 1, single buffered']
    #allocation6 [shape = 's32[1]{0}', space=sflag, size = 0x4, scoped, tag = 'scoped memory for tpu_custom_call.1']
    #allocation7 [shape = 'u8[4096]{0}', space=vmem, size = 0x1000, scoped, tag = 'output window, operand 0, single buffered']
    %7 = vsyncpa [#allocation3], 0
    %8 = vsyncpa [#allocation6], 0
    %9 = vsyncpa [#allocation4], 0
    // Predicated region
    $region2: #{tpu_custom_call.1} parent=1 // pred_check
      _
    $region3: #{tpu_custom_call.1} parent=1 // pred_check_branch
      %11 = sbr.rel (0) target = $region5
    $region4: #{tpu_custom_call.1} parent=1 // pred_region
      %13 = vsyncadd [#allocation3], 0
      %s15 = sshll.u32 %s0, 4
      %s16 = int_to_ptr.hbm [resolvable:$true] %s15
      %s17 = sshll.u32 [#allocation2], 4
      %s18 = int_to_ptr.vmem [resolvable:$true] %s17
      %20 = dma.hbm_to_vmem [thread:$0]  %s16, 128, %s18, [#allocation3]
    $region5: #{tpu_custom_call.1} parent=1 // pred_fallthru
      _
    // Predicated region
    $region6: #{tpu_custom_call.1} parent=1 // pred_check
      _
    $region7: #{tpu_custom_call.1} parent=1 // pred_check_branch
      %22 = sbr.rel (0) target = $region9
    $region8: #{tpu_custom_call.1} parent=1 // pred_region
      %24 = vsyncadd [#allocation6], 0
      %s26 = sshll.u32 %s1, 4
      %s27 = int_to_ptr.hbm [resolvable:$true] %s26
      %s28 = sshll.u32 [#allocation5], 4
      %s29 = int_to_ptr.vmem [resolvable:$true] %s28
      %31 = dma.hbm_to_vmem [thread:$0]  %s27, 128, %s29, [#allocation6]
    $region9: #{tpu_custom_call.1} parent=1 // pred_fallthru
      _
    // Predicated region
    $region10: #{tpu_custom_call.1} parent=1 // pred_check
      _
    $region11: #{tpu_custom_call.1} parent=1 // pred_check_branch
      %33 = sbr.rel (0) target = $region13
    $region12: #{tpu_custom_call.1} parent=1 // pred_region
      %35 = dma.done [#allocation3], 128
    $region13: #{tpu_custom_call.1} parent=1 // pred_fallthru
      _
    // Predicated region
    $region14: #{tpu_custom_call.1} parent=1 // pred_check
      _
    $region15: #{tpu_custom_call.1} parent=1 // pred_check_branch
      %37 = sbr.rel (0) target = $region17
    $region16: #{tpu_custom_call.1} parent=1 // pred_region
      %39 = dma.done [#allocation6], 128
    $region17: #{tpu_custom_call.1} parent=1 // pred_fallthru
      _
    %v40 = vld [vmem:[#allocation2] sm:$0xff]
    %v41 = vld [vmem:[#allocation5] sm:$0xff]
    %v42 = vlog2.pop %v40
    %v43 = vmul.f32 %v42, 0.6931472
    %v44 = vmax.f32 %v43, -100.0
    %v45 = vsub.f32 1.0, %v40
    %v46 = vlog2.pop %v45
    %v47 = vmul.f32 %v46, 0.6931472
    %v48 = vmax.f32 %v47, -100.0
    %v49 = vmul.f32 %v41, %v44
    %v50 = vsub.f32 1.0, %v41
    %v51 = vmul.f32 %v50, %v48
    %v52 = vadd.f32 %v49, %v51
    %v53 = vsub.f32 0.0, %v52
    %v54 = vadd.f32 %v53, 0.0
    %55 = vst [vmem:[#allocation7] sm:$0xff] %v54
    // Predicated region
    $region18: #{tpu_custom_call.1} parent=1 // pred_check
      _
    $region19: #{tpu_custom_call.1} parent=1 // pred_check_branch
      %57 = sbr.rel (0) target = $region21
    $region20: #{tpu_custom_call.1} parent=1 // pred_region
      %59 = vsyncadd [#allocation4], 0
      %s61 = sshll.u32 [#allocation7], 4
      %s62 = int_to_ptr.vmem [resolvable:$true] %s61
      %s63 = sshll.u32 %s2, 4
      %s64 = int_to_ptr.hbm [resolvable:$true] %s63
      %66 = dma.vmem_to_hbm [thread:$0]  %s62, 128, %s64, [#allocation4]
    $region21: #{tpu_custom_call.1} parent=1 // pred_fallthru
      _
    // Predicated region
    $region22: #{tpu_custom_call.1} parent=1 // pred_check
      _
    $region23: #{tpu_custom_call.1} parent=1 // pred_check_branch
      %68 = sbr.rel (0) target = $region25
    $region24: #{tpu_custom_call.1} parent=1 // pred_region
      %70 = dma.done [#allocation4], 128
    $region25: #{tpu_custom_call.1} parent=1 // pred_fallthru
      _
    %71 = vsyncpa [#allocation3], 1
    %72 = vsyncpa [#allocation6], 1
    %73 = vsyncpa [#allocation4], 1

</llo_original>
